<compile_context>
chip_gen: v6e
topology: v6e:2x2x1
jax: 0.10.0
libtpu: 0.0.40
codegen_flags: <defaults>
</compile_context>

<pallas_src>
import functools

import jax
import jax.numpy as jnp
from jax.experimental import pallas as pl
from jax.experimental.pallas import tpu as pltpu


def _round_up(n, m):
    return (n + m - 1) // m * m


def _const_net_kernel(x_ref, w1_ref, b1_ref, w2_ref, b2_ref, o_ref, *, compute_dtype):
    # x_ref : (B_tile, D_in)   VMEM
    # w1_ref: (D_in, W)        VMEM (resident across grid)
    # b1_ref: (1, W)           VMEM (f32, resident)
    # w2_ref: (W, D_out)       VMEM (resident)
    # b2_ref: (1, D_out)       VMEM (f32, resident)
    # o_ref : (B_tile, D_out)  VMEM
    x = x_ref[...].astype(compute_dtype)
    w1 = w1_ref[...].astype(compute_dtype)
    # First linear (MXU, f32 accumulation) + bias + ReLU (VPU, f32).
    h = jnp.dot(x, w1, preferred_element_type=jnp.float32) + b1_ref[...]
    h = jnp.maximum(h, 0.0)
    # Second linear (MXU, f32 accumulation) + bias.
    w2 = w2_ref[...].astype(compute_dtype)
    out = jnp.dot(h.astype(compute_dtype), w2,
                  preferred_element_type=jnp.float32) + b2_ref[...]
    o_ref[...] = out.astype(o_ref.dtype)


def prepare_const_net_params(w1, b1, w2, b2, compute_dtype=None):
    """One-time packing of parameters for the kernel (call once at init).

    Weights stay (in_features, out_features); biases become (1, N) float32 so
    the per-call wrapper does zero weight-side work (no pads / reshapes / casts
    on every forward)."""
    wdt = compute_dtype if compute_dtype is not None else w1.dtype
    w1p = jnp.asarray(w1, wdt)
    w2p = jnp.asarray(w2, wdt)
    b1p = jnp.asarray(b1, jnp.float32).reshape(1, -1)
    b2p = jnp.asarray(b2, jnp.float32).reshape(1, -1)
    return w1p, b1p, w2p, b2p


def const_net_forward(x, w1, b1_2d, w2, b2_2d, n_comp_out, *,
                      compute_dtype=None, tile_b=4096, gridless_batch=1024):
    """x: (batch, n_timestep, n_comp_in) -> (batch, n_timestep, n_comp_out).

    w1:(D_in,W), b1_2d:(1,W) f32, w2:(W,D_out), b2_2d:(1,D_out) f32 — as
    returned by prepare_const_net_params."""
    batch, nsteps, _ = x.shape
    d_in, width = w1.shape
    d_out = w2.shape[1]
    out_dtype = x.dtype

    flat_x = x.reshape(batch, -1)          # (B, T*C_in), same ordering as torch .reshape
    assert flat_x.shape[1] == d_in

    if compute_dtype is None:
        compute_dtype = x.dtype
    elif flat_x.dtype != compute_dtype:
        # Cast at the boundary so HBM->VMEM DMA bytes shrink (bf16 throughput path).
        flat_x = flat_x.astype(compute_dtype)

    kernel = functools.partial(_const_net_kernel, compute_dtype=compute_dtype)

    if batch <= gridless_batch:
        # Tiny problem: no grid — single invocation, whole arrays resident in VMEM
        # (removes per-grid-step bookkeeping on a launch-latency-bound call).
        out_flat = pl.pallas_call(
            kernel,
            out_shape=jax.ShapeDtypeStruct((batch, d_out), out_dtype),
            in_specs=[pl.BlockSpec(memory_space=pltpu.MemorySpace.VMEM)] * 5,
            out_specs=pl.BlockSpec(memory_space=pltpu.MemorySpace.VMEM),
        )(flat_x, w1, b1_2d, w2, b2_2d)
    else:
        # Large batch: tile the batch axis only; weights/biases stay resident
        # (index_map -> (0,0)). No padding of x, output, or batch — Pallas masks
        # the partial last tile. Keep >= ~8 tiles so v7x's two TensorCores split
        # the work via the "parallel" axis; keep tiles a multiple of 8 rows.
        max_tile = max(8, _round_up(pl.cdiv(batch, 8), 8))
        tb = min(int(tile_b), max_tile)
        tb = max(8, _round_up(tb, 8))
        grid = (pl.cdiv(batch, tb),)

        out_flat = pl.pallas_call(
            kernel,
            out_shape=jax.ShapeDtypeStruct((batch, d_out), out_dtype),
            grid_spec=pltpu.PrefetchScalarGridSpec(
                num_scalar_prefetch=0,
                grid=grid,
                in_specs=[
                    pl.BlockSpec((tb, d_in), lambda i: (i, 0)),
                    pl.BlockSpec((d_in, width), lambda i: (0, 0)),
                    pl.BlockSpec((1, width), lambda i: (0, 0)),
                    pl.BlockSpec((width, d_out), lambda i: (0, 0)),
                    pl.BlockSpec((1, d_out), lambda i: (0, 0)),
                ],
                out_specs=pl.BlockSpec((tb, d_out), lambda i: (i, 0)),
            ),
            compiler_params=pltpu.CompilerParams(
                dimension_semantics=("parallel",)),
        )(flat_x, w1, b1_2d, w2, b2_2d)

    return out_flat.reshape(batch, nsteps, n_comp_out)


def init_const_net_params(key, n_comp_in=1, n_comp_out=1, width=128, n_timestep=50):
    """Deterministic init mimicking torch.nn.Linear default (uniform +/- 1/sqrt(fan_in)).

    Weights stored as (in_features, out_features); biases 1-D."""
    d_in = n_comp_in * n_timestep
    d_out = n_comp_out * n_timestep
    k1, k2, k3, k4 = jax.random.split(key, 4)
    bound1 = 1.0 / jnp.sqrt(d_in)
    bound2 = 1.0 / jnp.sqrt(width)
    w1 = jax.random.uniform(k1, (d_in, width), jnp.float32, -bound1, bound1)
    b1 = jax.random.uniform(k2, (width,), jnp.float32, -bound1, bound1)
    w2 = jax.random.uniform(k3, (width, d_out), jnp.float32, -bound2, bound2)
    b2 = jax.random.uniform(k4, (d_out,), jnp.float32, -bound2, bound2)
    return w1, b1, w2, b2


def _reference(x, w1, b1, w2, b2, n_comp_out):
    batch, nsteps, _ = x.shape
    h = jnp.maximum(x.reshape(batch, -1) @ w1 + b1, 0.0)
    return (h @ w2 + b2).reshape(batch, nsteps, n_comp_out)


if __name__ == "__main__":
    key = jax.random.PRNGKey(0)
    kp, kx1, kx2 = jax.random.split(key, 3)

    n_comp_in, n_comp_out, width, n_timestep = 1, 1, 128, 50

    w1, b1, w2, b2 = init_const_net_params(
        kp, n_comp_in=n_comp_in, n_comp_out=n_comp_out,
        width=width, n_timestep=n_timestep)
    # One-time parameter packing (hoisted out of the forward path).
    w1p, b1p, w2p, b2p = prepare_const_net_params(w1, b1, w2, b2)

    # --- Small-batch path (grid-less, whole arrays in VMEM) ---
    batch = 8
    x = jax.random.normal(kx1, (batch, n_timestep, n_comp_in), jnp.float32)
    out = const_net_forward(x, w1p, b1p, w2p, b2p, n_comp_out)
    jax.block_until_ready(out)
    ref = _reference(x, w1, b1, w2, b2, n_comp_out)
    assert out.shape == (batch, n_timestep, n_comp_out)
    assert jnp.allclose(out, ref, atol=1e-5, rtol=1e-5)

    # --- Batch-tiled path with a PARTIAL last tile (batch % tile_b != 0) ---
    # Exercised with a small tile so the grid/parallel/masked-tail variant
    # compiles & runs; in production tile_b stays at the 4096 default.
    batch2 = 20
    x2 = jax.random.normal(kx2, (batch2, n_timestep, n_comp_in), jnp.float32)
    out2 = const_net_forward(x2, w1p, b1p, w2p, b2p, n_comp_out,
                             tile_b=8, gridless_batch=8)
    jax.block_until_ready(out2)
    ref2 = _reference(x2, w1, b1, w2, b2, n_comp_out)
    assert out2.shape == (batch2, n_timestep, n_comp_out)
    assert jnp.allclose(out2, ref2, atol=1e-5, rtol=1e-5)

    print("KERNEL_OK")
</pallas_src>

<mosaic_0001>
module attributes {stable_mosaic.version = 11 : i64} {
  func.func @_const_net_kernel(%arg0: memref<8x50xf32, #tpu.memory_space<vmem>>, %arg1: memref<50x128xf32, #tpu.memory_space<vmem>>, %arg2: memref<1x128xf32, #tpu.memory_space<vmem>>, %arg3: memref<128x50xf32, #tpu.memory_space<vmem>>, %arg4: memref<1x50xf32, #tpu.memory_space<vmem>>, %arg5: memref<8x50xf32, #tpu.memory_space<vmem>>) attributes {dimension_semantics = [], scalar_prefetch = 0 : i64, scratch_operands = 0 : i64, tpu.core_type = #tpu.core_type<tc>} {
    %c0 = arith.constant 0 : index
    %c0_0 = arith.constant 0 : index
    %0 = vector.load %arg0[%c0, %c0_0] : memref<8x50xf32, #tpu.memory_space<vmem>>, vector<8x50xf32>
    %c0_1 = arith.constant 0 : index
    %c0_2 = arith.constant 0 : index
    %1 = vector.load %arg1[%c0_1, %c0_2] : memref<50x128xf32, #tpu.memory_space<vmem>>, vector<50x128xf32>
    %cst = arith.constant dense<0.000000e+00> : vector<8x128xf32>
    %2 = tpu.matmul %0, %1, %cst {dimension_numbers = #tpu.dot_dimension_numbers<[1], [0], [0], [1], [0, 0, 1, 1], [], []>} : vector<8x50xf32>, vector<50x128xf32>, vector<8x128xf32> -> vector<8x128xf32>
    %c0_3 = arith.constant 0 : index
    %c0_4 = arith.constant 0 : index
    %3 = vector.load %arg2[%c0_3, %c0_4] : memref<1x128xf32, #tpu.memory_space<vmem>>, vector<1x128xf32>
    %4 = vector.broadcast %3 : vector<1x128xf32> to vector<8x128xf32>
    %5 = arith.addf %2, %4 : vector<8x128xf32>
    %cst_5 = arith.constant 0.000000e+00 : f32
    %6 = vector.broadcast %cst_5 : f32 to vector<8x128xf32>
    %7 = arith.maximumf %5, %6 : vector<8x128xf32>
    %c0_6 = arith.constant 0 : index
    %c0_7 = arith.constant 0 : index
    %8 = vector.load %arg3[%c0_6, %c0_7] : memref<128x50xf32, #tpu.memory_space<vmem>>, vector<128x50xf32>
    %cst_8 = arith.constant dense<0.000000e+00> : vector<8x50xf32>
    %9 = tpu.matmul %7, %8, %cst_8 {dimension_numbers = #tpu.dot_dimension_numbers<[1], [0], [0], [1], [0, 0, 1, 1], [], []>} : vector<8x128xf32>, vector<128x50xf32>, vector<8x50xf32> -> vector<8x50xf32>
    %c0_9 = arith.constant 0 : index
    %c0_10 = arith.constant 0 : index
    %10 = vector.load %arg4[%c0_9, %c0_10] : memref<1x50xf32, #tpu.memory_space<vmem>>, vector<1x50xf32>
    %11 = vector.broadcast %10 : vector<1x50xf32> to vector<8x50xf32>
    %12 = arith.addf %9, %11 : vector<8x50xf32>
    %c0_11 = arith.constant 0 : index
    %c0_12 = arith.constant 0 : index
    %13 = vector.load %arg5[%c0_11, %c0_12] : memref<8x50xf32, #tpu.memory_space<vmem>>, vector<8x50xf32>
    tpu.vector_store %arg5[%c0_11, %c0_12], %12 {strides = array<i32>} : memref<8x50xf32, #tpu.memory_space<vmem>>, vector<8x50xf32>,
    return
  }
}

</mosaic_0001>

<llo_original>
// kernel: tpu_custom_call.1
$region0: #{tpu_custom_call.1}
  #allocation0 [shape = 'u32[]', space=smem, size = 0x4, offset = 0x4, fixed_abs, tag = 'smem constant byte address 0x4 - core index']
  #allocation1 [shape = 'u32[144,128]{1,0:T(1,128)}', space=vmem, size = 0x12000, scoped, tag = 'internal scratch']
  %s0 = inlined_call_operand.vmem [shape: f32[8,50], index: 0, kind: input, shape index: {}]
  %s1 = inlined_call_operand.vmem [shape: f32[50,128], index: 1, kind: input, shape index: {}]
  %s2 = inlined_call_operand.vmem [shape: f32[1,128], index: 2, kind: input, shape index: {}]
  %s3 = inlined_call_operand.vmem [shape: f32[128,50], index: 3, kind: input, shape index: {}]
  %s4 = inlined_call_operand.vmem [shape: f32[1,50], index: 4, kind: input, shape index: {}]
  %s5 = inlined_call_operand.hbm [shape: f32[8,50], index: 5, kind: output, shape index: {}]
  %s6 = sld [smem:[#allocation0]]
  $region30: #{tpu_custom_call.1} parent=0
    _
  %s8 = ssub.s32 1, %s6
  %s9 = scalar_select 0, %s8, %s6
  $region1: #{tpu_custom_call.1} parent=0
    #allocation2 [shape = 'u8[4096]{0}', space=vmem, size = 0x1000, scoped, tag = 'output window, operand 0, single buffered']
    #allocation3 [shape = 's32[1]{0}', space=sflag, size = 0x4, scoped, tag = 'scoped memory for tpu_custom_call.1']
    %10 = vsyncpa [#allocation3], 0
    // Predicated region
    $region2: #{tpu_custom_call.1} parent=1 // pred_check
      _
    $region3: #{tpu_custom_call.1} parent=1 // pred_check_branch
      %12 = sbr.rel (0) target = $region5
    $region4: #{tpu_custom_call.1} parent=1 // pred_region
      _
    $region5: #{tpu_custom_call.1} parent=1 // pred_fallthru
      _
    // Predicated region
    $region6: #{tpu_custom_call.1} parent=1 // pred_check
      _
    $region7: #{tpu_custom_call.1} parent=1 // pred_check_branch
      %14 = sbr.rel (0) target = $region9
    $region8: #{tpu_custom_call.1} parent=1 // pred_region
      _
    $region9: #{tpu_custom_call.1} parent=1 // pred_fallthru
      _
    // Predicated region
    $region10: #{tpu_custom_call.1} parent=1 // pred_check
      _
    $region11: #{tpu_custom_call.1} parent=1 // pred_check_branch
      %16 = sbr.rel (0) target = $region13
    $region12: #{tpu_custom_call.1} parent=1 // pred_region
      _
    $region13: #{tpu_custom_call.1} parent=1 // pred_fallthru
      _
    // Predicated region
    $region14: #{tpu_custom_call.1} parent=1 // pred_check
      _
    $region15: #{tpu_custom_call.1} parent=1 // pred_check_branch
      %18 = sbr.rel (0) target = $region17
    $region16: #{tpu_custom_call.1} parent=1 // pred_region
      _
    $region17: #{tpu_custom_call.1} parent=1 // pred_fallthru
      _
    // Predicated region
    $region18: #{tpu_custom_call.1} parent=1 // pred_check
      _
    $region19: #{tpu_custom_call.1} parent=1 // pred_check_branch
      %20 = sbr.rel (0) target = $region21
    $region20: #{tpu_custom_call.1} parent=1 // pred_region
      _
    $region21: #{tpu_custom_call.1} parent=1 // pred_fallthru
      _
    %v21 = vld [vmem:[%s0] sm:$0xff]
    %v22 = vld [vmem:[%s1] sm:$0xff]
    %v23 = vld [vmem:[%s1 + $0x8] sm:$0xff]
    %v24 = vld [vmem:[%s1 + $0x10] sm:$0xff]
    %v25 = vld [vmem:[%s1 + $0x18] sm:$0xff]
    %v26 = vld [vmem:[%s1 + $0x20] sm:$0xff]
    %v27 = vld [vmem:[%s1 + $0x28] sm:$0xff]
    %v28 = vld [vmem:[%s1 + $0x30] sm:$0x3]
    %v29 = vld [vmem:[%s2] sm:$0x1]
    %v31 = vlaneseq
    %v32 = vshrl.u32 %v31, 7
    %v33 = vsub.s32 0, %v32
    %v34 = vrot.slane %v29, %v33
    %vm36 = vcmask 408576
    %v38 = vsel %vm36, %v21, 0
    %vm40 = vcmask 1041408
    %v42 = vsel %vm40, %v28, 0
    %44 = vmatprep.subr.mxu0 0.0
    %45 = vmatpush1.msra.mxu0 0.0
    %46 = vmatprep.subr.mxu0 0.0
    %47 = vmatpush1.msra.mxu0 0.0
    %48 = vmatprep.subr.mxu0 0.0
    %49 = vmatpush1.msra.mxu0 0.0
    %50 = vmatprep.subr.mxu0 0.0
    %51 = vmatpush1.msra.mxu0 0.0
    %52 = vmatprep.subr.mxu0 0.0
    %53 = vmatpush1.msra.mxu0 0.0
    %54 = vmatprep.subr.mxu0 0.0
    %55 = vmatpush1.msra.mxu0 0.0
    %56 = vmatprep.subr.mxu0 0.0
    %57 = vmatpush1.msra.mxu0 0.0
    %58 = vmatprep.subr.mxu0 0.0
    %59 = vmatpush1.msra.mxu0 0.0
    %60 = vmatprep.subr.mxu0 0.0
    %61 = vmatpush1.msra.mxu0 0.0
    %62 = vmatprep.subr.mxu0 0.0
    %63 = vmatpush1.msra.mxu0 %v42
    %64 = vmatprep.subr.mxu0 0.0
    %65 = vmatpush1.msra.mxu0 %v27
    %66 = vmatprep.subr.mxu0 0.0
    %67 = vmatpush1.msra.mxu0 %v26
    %68 = vmatprep.subr.mxu0 0.0
    %69 = vmatpush1.msra.mxu0 %v25
    %70 = vmatprep.subr.mxu0 0.0
    %71 = vmatpush1.msra.mxu0 %v24
    %72 = vmatprep.subr.mxu0 0.0
    %73 = vmatpush1.msra.mxu0 %v23
    %74 = vmatprep.subr.mxu0 0.0
    %75 = vmatpush1.msra.mxu0 %v22
    %76 = vmatprep.subr.mxu0 0.0
    %77 = vmatpush2.msra.mxu0 0.0
    %78 = vmatprep.subr.mxu0 0.0
    %79 = vmatpush2.msra.mxu0 0.0
    %80 = vmatprep.subr.mxu0 0.0
    %81 = vmatpush2.msra.mxu0 0.0
    %82 = vmatprep.subr.mxu0 0.0
    %83 = vmatpush2.msra.mxu0 0.0
    %84 = vmatprep.subr.mxu0 0.0
    %85 = vmatpush2.msra.mxu0 0.0
    %86 = vmatprep.subr.mxu0 0.0
    %87 = vmatpush2.msra.mxu0 0.0
    %88 = vmatprep.subr.mxu0 0.0
    %89 = vmatpush2.msra.mxu0 0.0
    %90 = vmatprep.subr.mxu0 0.0
    %91 = vmatpush2.msra.mxu0 0.0
    %92 = vmatprep.subr.mxu0 0.0
    %93 = vmatpush2.msra.mxu0 0.0
    %94 = vmatprep.subr.mxu0 0.0
    %95 = vmatpush2.msra.mxu0 0.0
    %96 = vmatprep.subr.mxu0 0.0
    %97 = vmatpush2.msra.mxu0 0.0
    %98 = vmatprep.subr.mxu0 0.0
    %99 = vmatpush2.msra.mxu0 0.0
    %100 = vmatprep.subr.mxu0 0.0
    %101 = vmatpush2.msra.mxu0 0.0
    %102 = vmatprep.subr.mxu0 0.0
    %103 = vmatpush2.msra.mxu0 0.0
    %104 = vmatprep.subr.mxu0 0.0
    %105 = vmatpush2.msra.mxu0 0.0
    %106 = vmatprep.subr.mxu0 0.0
    %107 = vmatpush2.msra.mxu0 0.0
    %108 = vmatprep.mubr.f32.mxu0 0.0
    %109 = vmatmul.mubr.f32.gmra.mxu0 %v38
    %v110 = vpop.f32.mrf.mxu0
    %v111 = vadd.f32 %v34, %v110
    %v112 = vpop.f32.mrf.mxu0
    %113 = vdwg.mxu0
    %v114 = vmax.f32 %v111, 0.0
    %v115 = vld [vmem:[%s3] sm:$0xff]
    %v116 = vld [vmem:[%s3 + $0x8] sm:$0xff]
    %v117 = vld [vmem:[%s3 + $0x10] sm:$0xff]
    %v118 = vld [vmem:[%s3 + $0x18] sm:$0xff]
    %v119 = vld [vmem:[%s3 + $0x20] sm:$0xff]
    %v120 = vld [vmem:[%s3 + $0x28] sm:$0xff]
    %v121 = vld [vmem:[%s3 + $0x30] sm:$0xff]
    %v122 = vld [vmem:[%s3 + $0x38] sm:$0xff]
    %v123 = vld [vmem:[%s3 + $0x40] sm:$0xff]
    %v124 = vld [vmem:[%s3 + $0x48] sm:$0xff]
    %v125 = vld [vmem:[%s3 + $0x50] sm:$0xff]
    %v126 = vld [vmem:[%s3 + $0x58] sm:$0xff]
    %v127 = vld [vmem:[%s3 + $0x60] sm:$0xff]
    %v128 = vld [vmem:[%s3 + $0x68] sm:$0xff]
    %v129 = vld [vmem:[%s3 + $0x70] sm:$0xff]
    %v130 = vld [vmem:[%s3 + $0x78] sm:$0xff]
    %v131 = vld [vmem:[%s4] sm:$0x1]
    %v133 = vlaneseq
    %v134 = vshrl.u32 %v133, 7
    %v135 = vsub.s32 0, %v134
    %v136 = vrot.slane %v131, %v135
    %138 = vmatprep.subr.mxu0 0.0
    %139 = vmatpush1.msra.mxu0 %v130
    %140 = vmatprep.subr.mxu0 0.0
    %141 = vmatpush1.msra.mxu0 %v129
    %142 = vmatprep.subr.mxu0 0.0
    %143 = vmatpush1.msra.mxu0 %v128
    %144 = vmatprep.subr.mxu0 0.0
    %145 = vmatpush1.msra.mxu0 %v127
    %146 = vmatprep.subr.mxu0 0.0
    %147 = vmatpush1.msra.mxu0 %v126
    %148 = vmatprep.subr.mxu0 0.0
    %149 = vmatpush1.msra.mxu0 %v125
    %150 = vmatprep.subr.mxu0 0.0
    %151 = vmatpush1.msra.mxu0 %v124
    %152 = vmatprep.subr.mxu0 0.0
    %153 = vmatpush1.msra.mxu0 %v123
    %154 = vmatprep.subr.mxu0 0.0
    %155 = vmatpush1.msra.mxu0 %v122
    %156 = vmatprep.subr.mxu0 0.0
    %157 = vmatpush1.msra.mxu0 %v121
    %158 = vmatprep.subr.mxu0 0.0
    %159 = vmatpush1.msra.mxu0 %v120
    %160 = vmatprep.subr.mxu0 0.0
    %161 = vmatpush1.msra.mxu0 %v119
    %162 = vmatprep.subr.mxu0 0.0
    %163 = vmatpush1.msra.mxu0 %v118
    %164 = vmatprep.subr.mxu0 0.0
    %165 = vmatpush1.msra.mxu0 %v117
    %166 = vmatprep.subr.mxu0 0.0
    %167 = vmatpush1.msra.mxu0 %v116
    %168 = vmatprep.subr.mxu0 0.0
    %169 = vmatpush1.msra.mxu0 %v115
    %170 = vmatprep.subr.mxu0 0.0
    %171 = vmatpush2.msra.mxu0 0.0
    %172 = vmatprep.subr.mxu0 0.0
    %173 = vmatpush2.msra.mxu0 0.0
    %174 = vmatprep.subr.mxu0 0.0
    %175 = vmatpush2.msra.mxu0 0.0
    %176 = vmatprep.subr.mxu0 0.0
    %177 = vmatpush2.msra.mxu0 0.0
    %178 = vmatprep.subr.mxu0 0.0
    %179 = vmatpush2.msra.mxu0 0.0
    %180 = vmatprep.subr.mxu0 0.0
    %181 = vmatpush2.msra.mxu0 0.0
    %182 = vmatprep.subr.mxu0 0.0
    %183 = vmatpush2.msra.mxu0 0.0
    %184 = vmatprep.subr.mxu0 0.0
    %185 = vmatpush2.msra.mxu0 0.0
    %186 = vmatprep.subr.mxu0 0.0
    %187 = vmatpush2.msra.mxu0 0.0
    %188 = vmatprep.subr.mxu0 0.0
    %189 = vmatpush2.msra.mxu0 0.0
    %190 = vmatprep.subr.mxu0 0.0
    %191 = vmatpush2.msra.mxu0 0.0
    %192 = vmatprep.subr.mxu0 0.0
    %193 = vmatpush2.msra.mxu0 0.0
    %194 = vmatprep.subr.mxu0 0.0
    %195 = vmatpush2.msra.mxu0 0.0
    %196 = vmatprep.subr.mxu0 0.0
    %197 = vmatpush2.msra.mxu0 0.0
    %198 = vmatprep.subr.mxu0 0.0
    %199 = vmatpush2.msra.mxu0 0.0
    %200 = vmatprep.subr.mxu0 0.0
    %201 = vmatpush2.msra.mxu0 0.0
    %202 = vmatprep.mubr.f32.mxu0 0.0
    %203 = vmatmul.mubr.f32.gmra.mxu0 %v114
    %v204 = vpop.f32.mrf.mxu0
    %v205 = vadd.f32 %v136, %v204
    %v206 = vpop.f32.mrf.mxu0
    %207 = vdwg.mxu0
    %208 = vst.msk [vmem:[#allocation2] sm:$0xff] %vm36, %v205
    // Predicated region
    $region22: #{tpu_custom_call.1} parent=1 // pred_check
      _
    $region23: #{tpu_custom_call.1} parent=1 // pred_check_branch
      %210 = sbr.rel (0) target = $region25
    $region24: #{tpu_custom_call.1} parent=1 // pred_region
      %s212 = ssub.s32 128, 128
      %213 = vsyncadd [#allocation3], %s212
      %s215 = sshll.u32 [#allocation2], 4
      %s216 = int_to_ptr.vmem [resolvable:$true] %s215
      %218 = dma.vmem_to_hbm [thread:$0]  %s216, 128, %s5, [#allocation3]
    $region25: #{tpu_custom_call.1} parent=1 // pred_fallthru
      _
    // Predicated region
    $region26: #{tpu_custom_call.1} parent=1 // pred_check
      _
    $region27: #{tpu_custom_call.1} parent=1 // pred_check_branch
      %220 = sbr.rel (0) target = $region29
    $region28: #{tpu_custom_call.1} parent=1 // pred_region
      %221 = dma.done [#allocation3], 128
    $region29: #{tpu_custom_call.1} parent=1 // pred_fallthru
      _
    %222 = vsyncpa [#allocation3], 1

</llo_original>
